<compile_context>
chip_gen: v5e
topology: v5e:2x2
jax: 0.10.0
libtpu: 0.0.40
codegen_flags: <defaults>
</compile_context>

<pallas_src>
import math

import jax
import jax.numpy as jnp
from jax.experimental import pallas as pl
from jax.experimental.pallas import tpu as pltpu

EPSILON = 1e-10

# Conservative pipelined-tile budget: fits the default scoped VMEM limit on
# every generation (v5e 16 MiB default, v6e/v7x 32 MiB default / 64 MiB phys).
_VMEM_TILE_BUDGET = 16 * 1024 * 1024
_MAX_TILE_ROWS = 2048


def _zscore_kernel(x_ref, mean_ref, var_ref, o_ref):
    # x tile in native dtype; compute in f32, store back in native dtype.
    x = x_ref[...].astype(jnp.float32)          # (TB, P)
    mean = mean_ref[...]                        # (1, P) f32, broadcasts over rows
    var = var_ref[...]                          # (1, P) f32
    inv_std = jax.lax.rsqrt(var + EPSILON)      # EUP op, hidden under the DMA
    o_ref[...] = ((x - mean) * inv_std).astype(o_ref.dtype)


def online_standardize(x: jax.Array, mean: jax.Array, var: jax.Array) -> jax.Array:
    """(x - mean) / sqrt(var + eps) via a batch-tiled Pallas kernel.

    x: (B, P); mean, var: (P,).  Output dtype == input dtype.
    """
    B, P = x.shape
    dtype = x.dtype
    mean32 = mean.astype(jnp.float32)
    var32 = var.astype(jnp.float32)

    # --- Lane-dense fold: make the last dim a multiple of 128 when possible by
    # folding whole batch rows into the lane axis (row-major reshape only).
    if P % 128 != 0:
        fold = math.lcm(P, 128) // P
        if fold > 1 and B % fold == 0:
            x2 = x.reshape(B // fold, fold * P)
            mean2 = jnp.tile(mean32, fold)
            var2 = jnp.tile(var32, fold)
        else:
            x2, mean2, var2 = x, mean32, var32
    else:
        x2, mean2, var2 = x, mean32, var32

    B2, P2 = x2.shape
    mean2 = mean2.reshape(1, P2)
    var2 = var2.reshape(1, P2)

    # --- Batch-tile sizing: ~4 live tiles (double-buffered in + out); account
    # for the in-kernel f32 upcast with max(itemsize, 4).
    itemsize = max(jnp.dtype(dtype).itemsize, 4)
    max_rows = max(8, _VMEM_TILE_BUDGET // (4 * P2 * itemsize))
    max_rows = min(max_rows, _MAX_TILE_ROWS)
    if B2 <= max_rows:
        tb = B2                       # single block == full dim (always legal)
    else:
        tb = max(8, (max_rows // 8) * 8)   # (8,128)-tiling constraint on rows

    grid = (pl.cdiv(B2, tb),)

    out = pl.pallas_call(
        _zscore_kernel,
        out_shape=jax.ShapeDtypeStruct((B2, P2), dtype),
        grid=grid,
        in_specs=[
            pl.BlockSpec((tb, P2), lambda i: (i, 0)),
            pl.BlockSpec((1, P2), lambda i: (0, 0)),
            pl.BlockSpec((1, P2), lambda i: (0, 0)),
        ],
        out_specs=pl.BlockSpec((tb, P2), lambda i: (i, 0)),
        compiler_params=pltpu.CompilerParams(
            dimension_semantics=("parallel",)),
    )(x2, mean2, var2)

    return out.reshape(B, P)


class CustomParameterTransform:
    """JAX/Pallas port of the PyTorch CustomParameterTransform forward."""

    def __init__(self, n_parameters: int, marginal_indices=None,
                 online_z_score: bool = True):
        self.n_parameters = n_parameters
        self.online_z_score = online_z_score
        if online_z_score:
            # Deterministic synthetic running statistics (would normally be
            # accumulated online by the Welford update during training).
            k = jax.random.PRNGKey(42)
            km, kv = jax.random.split(k)
            self.mean = jax.random.normal(km, (n_parameters,), jnp.float32)
            self.var = jax.random.uniform(
                kv, (n_parameters,), jnp.float32, minval=0.5, maxval=2.0)
        else:
            self.mean = None
            self.var = None

    def __call__(self, parameters: jax.Array) -> jax.Array:
        if not self.online_z_score:
            # nn.Identity() branch: pure pass-through (glue, no kernel needed).
            return parameters
        return online_standardize(parameters, self.mean, self.var)


if __name__ == "__main__":
    batch = 8
    n_parameters = 16

    key = jax.random.PRNGKey(0)
    kx, kx2 = jax.random.split(key)
    x = jax.random.normal(kx, (batch, n_parameters), jnp.float32)

    # online_z_score=True path (the Pallas hot path; P=16 folds to lane-dense 128).
    module = CustomParameterTransform(n_parameters, marginal_indices=None,
                                      online_z_score=True)
    y = jax.block_until_ready(module(x))

    ref = (x - module.mean[None, :]) / jnp.sqrt(module.var[None, :] + EPSILON)
    assert y.shape == (batch, n_parameters)
    assert y.dtype == x.dtype
    assert jnp.allclose(y, ref, atol=1e-5, rtol=1e-5)

    # Batch not divisible by the fold factor -> exercises the no-fold fallback.
    x_odd = jax.random.normal(kx2, (5, n_parameters), jnp.float32)
    y_odd = jax.block_until_ready(module(x_odd))
    ref_odd = (x_odd - module.mean[None, :]) / jnp.sqrt(module.var[None, :] + EPSILON)
    assert jnp.allclose(y_odd, ref_odd, atol=1e-5, rtol=1e-5)

    # online_z_score=False path (identity).
    ident = CustomParameterTransform(n_parameters, marginal_indices=None,
                                     online_z_score=False)
    y2 = jax.block_until_ready(ident(x))
    assert jnp.allclose(y2, x)

    print("KERNEL_OK")
</pallas_src>

<mosaic_0001>
module attributes {stable_mosaic.version = 11 : i64} {
  func.func @_zscore_kernel(%arg0: i32, %arg1: memref<1x128xf32, #tpu.memory_space<vmem>>, %arg2: memref<1x128xf32, #tpu.memory_space<vmem>>, %arg3: memref<1x128xf32, #tpu.memory_space<vmem>>, %arg4: memref<1x128xf32, #tpu.memory_space<vmem>>) attributes {dimension_semantics = [#tpu.dimension_semantics<parallel>], iteration_bounds = array<i64: 1>, scalar_prefetch = 0 : i64, scratch_operands = 0 : i64, tpu.core_type = #tpu.core_type<tc>, window_params = [{transform_indices = @transform_0, window_bounds = array<i64: 1, 128>}, {pipeline_mode = #tpu.pipeline_mode<synchronous>, transform_indices = @transform_1, window_bounds = array<i64: 1, 128>}, {pipeline_mode = #tpu.pipeline_mode<synchronous>, transform_indices = @transform_2, window_bounds = array<i64: 1, 128>}, {transform_indices = @transform_3, window_bounds = array<i64: 1, 128>}]} {
    %c0 = arith.constant 0 : index
    %c0_0 = arith.constant 0 : index
    %0 = vector.load %arg1[%c0, %c0_0] : memref<1x128xf32, #tpu.memory_space<vmem>>, vector<1x128xf32>
    %c0_1 = arith.constant 0 : index
    %c0_2 = arith.constant 0 : index
    %1 = vector.load %arg2[%c0_1, %c0_2] : memref<1x128xf32, #tpu.memory_space<vmem>>, vector<1x128xf32>
    %c0_3 = arith.constant 0 : index
    %c0_4 = arith.constant 0 : index
    %2 = vector.load %arg3[%c0_3, %c0_4] : memref<1x128xf32, #tpu.memory_space<vmem>>, vector<1x128xf32>
    %cst = arith.constant 1.000000e-10 : f32
    %3 = vector.broadcast %cst : f32 to vector<1x128xf32>
    %4 = arith.addf %2, %3 : vector<1x128xf32>
    %5 = math.rsqrt %4 : vector<1x128xf32>
    %6 = arith.subf %0, %1 : vector<1x128xf32>
    %7 = arith.mulf %6, %5 : vector<1x128xf32>
    %c0_5 = arith.constant 0 : index
    %c0_6 = arith.constant 0 : index
    %8 = vector.load %arg4[%c0_5, %c0_6] : memref<1x128xf32, #tpu.memory_space<vmem>>, vector<1x128xf32>
    tpu.vector_store %arg4[%c0_5, %c0_6], %7 {strides = array<i32>} : memref<1x128xf32, #tpu.memory_space<vmem>>, vector<1x128xf32>,
    return
  }
  func.func @transform_0(%arg0: i32) -> (i32, i32) {
    %c0_i32 = arith.constant 0 : i32
    %c0_i32_0 = arith.constant 0 : i32
    return %arg0, %c0_i32 : i32, i32
  }
  func.func @transform_1(%arg0: i32) -> (i32, i32) {
    %c0_i32 = arith.constant 0 : i32
    %c0_i32_0 = arith.constant 0 : i32
    %c0_i32_1 = arith.constant 0 : i32
    return %c0_i32, %c0_i32_0 : i32, i32
  }
  func.func @transform_2(%arg0: i32) -> (i32, i32) {
    %c0_i32 = arith.constant 0 : i32
    %c0_i32_0 = arith.constant 0 : i32
    %c0_i32_1 = arith.constant 0 : i32
    return %c0_i32, %c0_i32_0 : i32, i32
  }
  func.func @transform_3(%arg0: i32) -> (i32, i32) {
    %c0_i32 = arith.constant 0 : i32
    %c0_i32_0 = arith.constant 0 : i32
    return %arg0, %c0_i32 : i32, i32
  }
}

</mosaic_0001>

<llo_original>
// kernel: tpu_custom_call.1
$region0: #{tpu_custom_call.1}
  #allocation0 [shape = 'u32[]', space=smem, size = 0x4, offset = 0x4, fixed_abs, tag = 'smem constant byte address 0x4 - core index']
  #allocation1 [shape = 'u32[72,128]{1,0:T(1,128)}', space=vmem, size = 0x9000, scoped, tag = 'internal scratch']
  %s0 = inlined_call_operand.hbm [shape: f32[1,128], index: 0, kind: input, shape index: {}]
  %s1 = inlined_call_operand.hbm [shape: f32[1,128], index: 1, kind: input, shape index: {}]
  %s2 = inlined_call_operand.vmem [shape: f32[1,128], index: 2, kind: input, shape index: {}]
  %s3 = inlined_call_operand.hbm [shape: f32[1,128], index: 3, kind: output, shape index: {}]
  %s4 = sld [smem:[#allocation0]]
  $region30: #{tpu_custom_call.1} parent=0
    _
  %s6 = ssub.s32 1, %s4
  %s7 = scalar_select 0, %s6, %s4
  $region1: #{tpu_custom_call.1} parent=0
    #allocation2 [shape = 'u8[512]{0}', space=vmem, size = 0x400, scoped, tag = 'input window, operand 0, single buffered']
    #allocation3 [shape = 's32[1]{0}', space=sflag, size = 0x4, scoped, tag = 'scoped memory for tpu_custom_call.1']
    #allocation4 [shape = 's32[1]{0}', space=sflag, size = 0x4, scoped, tag = 'scoped memory for tpu_custom_call.1']
    #allocation5 [shape = 'u8[512]{0}', space=vmem, size = 0x400, scoped, tag = 'input window, operand 1, single buffered']
    #allocation6 [shape = 's32[1]{0}', space=sflag, size = 0x4, scoped, tag = 'scoped memory for tpu_custom_call.1']
    #allocation7 [shape = 'u8[512]{0}', space=vmem, size = 0x400, scoped, tag = 'output window, operand 0, single buffered']
    %8 = vsyncpa [#allocation3], 0
    %9 = vsyncpa [#allocation6], 0
    %10 = vsyncpa [#allocation4], 0
    // Predicated region
    $region2: #{tpu_custom_call.1} parent=1 // pred_check
      _
    $region3: #{tpu_custom_call.1} parent=1 // pred_check_branch
      %12 = sbr.rel (0) target = $region5
    $region4: #{tpu_custom_call.1} parent=1 // pred_region
      %14 = vsyncadd [#allocation3], 0
      %s16 = sshll.u32 %s0, 4
      %s17 = int_to_ptr.hbm [resolvable:$true] %s16
      %s18 = sshll.u32 [#allocation2], 4
      %s19 = int_to_ptr.vmem [resolvable:$true] %s18
      %21 = dma.hbm_to_vmem [thread:$0]  %s17, 16, %s19, [#allocation3]
    $region5: #{tpu_custom_call.1} parent=1 // pred_fallthru
      _
    // Predicated region
    $region6: #{tpu_custom_call.1} parent=1 // pred_check
      _
    $region7: #{tpu_custom_call.1} parent=1 // pred_check_branch
      %23 = sbr.rel (0) target = $region9
    $region8: #{tpu_custom_call.1} parent=1 // pred_region
      %25 = vsyncadd [#allocation6], 0
      %s27 = sshll.u32 %s1, 4
      %s28 = int_to_ptr.hbm [resolvable:$true] %s27
      %s29 = sshll.u32 [#allocation5], 4
      %s30 = int_to_ptr.vmem [resolvable:$true] %s29
      %32 = dma.hbm_to_vmem [thread:$0]  %s28, 16, %s30, [#allocation6]
    $region9: #{tpu_custom_call.1} parent=1 // pred_fallthru
      _
    // Predicated region
    $region10: #{tpu_custom_call.1} parent=1 // pred_check
      _
    $region11: #{tpu_custom_call.1} parent=1 // pred_check_branch
      %34 = sbr.rel (0) target = $region13
    $region12: #{tpu_custom_call.1} parent=1 // pred_region
      _
    $region13: #{tpu_custom_call.1} parent=1 // pred_fallthru
      _
    // Predicated region
    $region14: #{tpu_custom_call.1} parent=1 // pred_check
      _
    $region15: #{tpu_custom_call.1} parent=1 // pred_check_branch
      %36 = sbr.rel (0) target = $region17
    $region16: #{tpu_custom_call.1} parent=1 // pred_region
      %38 = dma.done [#allocation3], 16
    $region17: #{tpu_custom_call.1} parent=1 // pred_fallthru
      _
    // Predicated region
    $region18: #{tpu_custom_call.1} parent=1 // pred_check
      _
    $region19: #{tpu_custom_call.1} parent=1 // pred_check_branch
      %40 = sbr.rel (0) target = $region21
    $region20: #{tpu_custom_call.1} parent=1 // pred_region
      %42 = dma.done [#allocation6], 16
    $region21: #{tpu_custom_call.1} parent=1 // pred_fallthru
      _
    %v43 = vld [vmem:[#allocation2] sm:$0x1]
    %v44 = vld [vmem:[#allocation5] sm:$0x1]
    %v45 = vld [vmem:[%s2] sm:$0x1]
    %v46 = vadd.f32 %v45, 1e-10
    %v47 = vrsqrt.pop %v46
    %v48 = vmul.f32 %v47, %v46
    %v49 = vmul.f32 %v48, %v47
    %v50 = vmul.f32 0.5, %v49
    %v51 = vsub.f32 1.5, %v50
    %v52 = vmul.f32 %v47, %v51
    %vm53 = vweird.f32 %v46
    %vm54 = vweird.f32 %v47
    %vm55 = vmor %vm53, %vm54
    %v56 = vsel %vm55, %v47, %v52
    %v57 = vsub.f32 %v43, %v44
    %v58 = vmul.f32 %v57, %v56
    %59 = vst [vmem:[#allocation7] sm:$0x1] %v58
    // Predicated region
    $region22: #{tpu_custom_call.1} parent=1 // pred_check
      _
    $region23: #{tpu_custom_call.1} parent=1 // pred_check_branch
      %61 = sbr.rel (0) target = $region25
    $region24: #{tpu_custom_call.1} parent=1 // pred_region
      %63 = vsyncadd [#allocation4], 0
      %s65 = sshll.u32 [#allocation7], 4
      %s66 = int_to_ptr.vmem [resolvable:$true] %s65
      %s67 = sshll.u32 %s3, 4
      %s68 = int_to_ptr.hbm [resolvable:$true] %s67
      %70 = dma.vmem_to_hbm [thread:$0]  %s66, 16, %s68, [#allocation4]
    $region25: #{tpu_custom_call.1} parent=1 // pred_fallthru
      _
    // Predicated region
    $region26: #{tpu_custom_call.1} parent=1 // pred_check
      _
    $region27: #{tpu_custom_call.1} parent=1 // pred_check_branch
      %72 = sbr.rel (0) target = $region29
    $region28: #{tpu_custom_call.1} parent=1 // pred_region
      %74 = dma.done [#allocation4], 16
    $region29: #{tpu_custom_call.1} parent=1 // pred_fallthru
      _
    %75 = vsyncpa [#allocation3], 1
    %76 = vsyncpa [#allocation6], 1
    %77 = vsyncpa [#allocation4], 1

</llo_original>
